<compile_context>
chip_gen: v5e
topology: v5e:2x2
jax: 0.10.0
libtpu: 0.0.40
codegen_flags: <defaults>
</compile_context>

<pallas_src>
import functools

import jax
import jax.numpy as jnp
from jax.experimental import pallas as pl
from jax.experimental.pallas import tpu as pltpu


def _round_up(n, m):
    return ((n + m - 1) // m) * m


def _cdiv(a, b):
    return -(-a // b)


def relation_fc3_kernel(x_ref, w3_ref, b3_ref, out_ref, acc_ref, *, d, td, need_mask):
    # x_ref:   (TB, TD) tile of x (native dtype)
    # w3_ref:  (1, TD)  f32 slice of the fc3 weight row
    # b3_ref:  (1,)     SMEM f32 bias scalar
    # out_ref: (TB, 1)  f32 output tile (same block across the k axis)
    # acc_ref: (TB, 1)  f32 VMEM accumulator
    k = pl.program_id(1)

    @pl.when(k == 0)
    def _():
        acc_ref[...] = jnp.zeros_like(acc_ref)

    # Matvec as VPU multiply + XLU cross-lane reduce (memory-bound N=1 matmul;
    # MXU would run nearly empty).  x promotes per element against the f32 w.
    prod = x_ref[...] * w3_ref[...]                                   # (TB, TD) f32
    if need_mask:
        # Last feature block is partial: zero out garbage tail columns.
        col = k * td + jax.lax.broadcasted_iota(jnp.int32, prod.shape, 1)
        prod = jnp.where(col < d, prod, 0.0)
    acc_ref[...] += jnp.sum(prod, axis=-1, keepdims=True, dtype=jnp.float32)

    @pl.when(k == pl.num_programs(1) - 1)
    def _():
        y = jax.nn.sigmoid(acc_ref[...] + b3_ref[0])
        out_ref[...] = y.astype(out_ref.dtype)


def _vmem_budget():
    """Generation-aware (vmem_limit_bytes, double-buffered x tile budget)."""
    try:
        info = pltpu.get_tpu_info()
        cap = int(getattr(info, "vmem_capacity_bytes", 0)) or (64 << 20)
    except Exception:
        cap = 64 << 20                      # conservative (v7x-sized) fallback
    cap = min(cap, 128 << 20)
    # v7x (64 MiB):  limit = 32 MiB, budget = 24 MiB
    # v5e/v6e (128): limit = 96 MiB, budget = 88 MiB
    vmem_limit = max(32 << 20, min(cap * 3 // 4, cap - (32 << 20)))
    tile_budget = max(16 << 20, vmem_limit - (8 << 20))
    return vmem_limit, tile_budget


def _choose_tiling(B, D, itemsize, tile_budget):
    """Pick (TB, TD): batch tile (multiple of 8) and feature tile (D or a
    multiple of 128) so the double-buffered x tile fits `tile_budget` and the
    batch grid has ~8 steps when B is large enough (megacore + pipelining)."""
    tb_split = _round_up(_cdiv(B, 8), 8)          # >= 8; targets ~8 batch steps
    row_bytes = max(1, D * itemsize)
    tb_full = (tile_budget // (2 * row_bytes)) // 8 * 8
    if tb_full >= 64:
        # Whole feature dim per block: lane-dense, single reduction step.
        TB = int(min(2048, tb_full, tb_split))
        TD = D
    else:
        # D too large for dense batch tiles: tile the feature dim instead.
        TB = int(min(512, tb_split))
        TD = int(max(128, (tile_budget // (2 * TB * itemsize)) // 128 * 128))
        if TD >= D:
            TD = D
    return max(8, TB), TD


def relation_network_forward(x, params, *, _force_tiles=None):
    """Returns sigmoid(fc3(x)), shape (B, 1) float32 -- the value the PyTorch
    module returns.  Only fc3/b3 from `params` reach the output (the fc1/fc2
    branch in the PyTorch module is dead code)."""
    _, _, _, _, w3, b3 = params                   # fc1/fc2 intentionally unused
    B = x.shape[0]
    x2d = x.reshape(B, -1)                        # out.view(out.size(0), -1)
    D = x2d.shape[1]
    itemsize = jnp.dtype(x2d.dtype).itemsize

    vmem_limit, tile_budget = _vmem_budget()
    if _force_tiles is None:
        TB, TD = _choose_tiling(B, D, itemsize, tile_budget)
    else:
        TB, TD = _force_tiles                     # test hook (exercise k-tiling)
    nb, nk = _cdiv(B, TB), _cdiv(D, TD)
    need_mask = (D % TD) != 0                     # partial last feature block?

    w3_row = w3.reshape(1, D).astype(jnp.float32)
    b3_s = b3.reshape(1).astype(jnp.float32)

    kernel = functools.partial(relation_fc3_kernel, d=D, td=TD, need_mask=need_mask)
    cost = pl.CostEstimate(
        flops=2 * B * D,
        transcendentals=B,
        bytes_accessed=B * D * itemsize + 4 * D + 4 + 4 * B,
    )

    out = pl.pallas_call(
        kernel,
        out_shape=jax.ShapeDtypeStruct((B, 1), jnp.float32),
        grid_spec=pltpu.PrefetchScalarGridSpec(
            num_scalar_prefetch=0,
            grid=(nb, nk),                        # reduction axis last
            in_specs=[
                pl.BlockSpec((TB, TD), lambda i, k: (i, k)),          # x tile
                pl.BlockSpec((1, TD), lambda i, k: (0, k)),           # w3 slice
                pl.BlockSpec(memory_space=pltpu.MemorySpace.SMEM),    # b3 scalar
            ],
            out_specs=pl.BlockSpec((TB, 1), lambda i, k: (i, 0)),
            scratch_shapes=[pltpu.VMEM((TB, 1), jnp.float32)],
        ),
        compiler_params=pltpu.CompilerParams(
            dimension_semantics=("parallel", "arbitrary"),
            vmem_limit_bytes=vmem_limit,
        ),
        cost_estimate=cost,
    )(x2d, w3_row, b3_s)
    return out


def init_params(key, input_size, hidden_size):
    """Deterministic init mirroring the module: xavier_uniform weights,
    PyTorch-default uniform(-1/sqrt(fan_in), 1/sqrt(fan_in)) biases.
    fc1/fc2 are created for module parity but never touch the output."""
    k1, k2, k3, kb1, kb2, kb3 = jax.random.split(key, 6)

    def xavier(k, fan_in, fan_out):
        bound = (6.0 / (fan_in + fan_out)) ** 0.5
        return jax.random.uniform(k, (fan_out, fan_in), jnp.float32,
                                  minval=-bound, maxval=bound)

    def bias(k, fan_in, fan_out):
        bound = 1.0 / (fan_in ** 0.5)
        return jax.random.uniform(k, (fan_out,), jnp.float32,
                                  minval=-bound, maxval=bound)

    w1 = xavier(k1, input_size, hidden_size)      # fc1: (H, D)  (dead branch)
    b1 = bias(kb1, input_size, hidden_size)       # (H,)
    w2 = xavier(k2, hidden_size, 1)               # fc2: (1, H)  (dead branch)
    b2 = bias(kb2, hidden_size, 1)                # (1,)
    w3 = xavier(k3, input_size, 1)                # fc3: (1, D)  <- used
    b3 = bias(kb3, input_size, 1)                 # (1,)         <- used
    return (w1, b1, w2, b2, w3, b3)


if __name__ == "__main__":
    key = jax.random.PRNGKey(0)

    def reference(x, params):
        _, _, _, _, w3, b3 = params
        x2d = x.reshape(x.shape[0], -1).astype(jnp.float32)
        return jax.nn.sigmoid(x2d @ w3.T + b3)

    # 1) Main case: (batch, input_size) = (8, 32), hidden = 32.
    k0, k1 = jax.random.split(key)
    params = init_params(k1, 32, 32)
    x = jax.random.normal(k0, (8, 32), jnp.float32)
    out = jax.block_until_ready(relation_network_forward(x, params))
    assert out.shape == (8, 1)
    assert jnp.allclose(out, reference(x, params), atol=1e-5), "case 1 mismatch"

    # 2) Partial last batch block + non-multiple-of-128 feature dim
    #    (exercises the no-padding / masked-partial-output path).
    k2, k3 = jax.random.split(k1)
    params2 = init_params(k3, 40, 32)
    x2 = jax.random.normal(k2, (13, 40), jnp.float32)
    out2 = jax.block_until_ready(relation_network_forward(x2, params2))
    assert out2.shape == (13, 1)
    assert jnp.allclose(out2, reference(x2, params2), atol=1e-5), "case 2 mismatch"

    # 3) Force the feature-tiled (k-axis accumulator) path, incl. masked tail.
    k4, k5 = jax.random.split(k3)
    params3 = init_params(k5, 300, 32)
    x3 = jax.random.normal(k4, (16, 300), jnp.float32)
    out3 = jax.block_until_ready(
        relation_network_forward(x3, params3, _force_tiles=(8, 128)))
    assert out3.shape == (16, 1)
    assert jnp.allclose(out3, reference(x3, params3), atol=1e-5), "case 3 mismatch"

    print("KERNEL_OK")
</pallas_src>

<mosaic_0001>
module attributes {stable_mosaic.version = 11 : i64} {
  func.func @relation_fc3_kernel(%arg0: i32, %arg1: i32, %arg2: memref<8x32xf32, #tpu.memory_space<vmem>>, %arg3: memref<1x32xf32, #tpu.memory_space<vmem>>, %arg4: memref<1xf32, #tpu.memory_space<smem>>, %arg5: memref<8x1xf32, #tpu.memory_space<vmem>>, %arg6: memref<8x1xf32, #tpu.memory_space<vmem>>) attributes {dimension_semantics = [#tpu.dimension_semantics<parallel>, #tpu.dimension_semantics<arbitrary>], iteration_bounds = array<i64: 1, 1>, scalar_prefetch = 0 : i64, scratch_operands = 1 : i64, tpu.core_type = #tpu.core_type<tc>, window_params = [{transform_indices = @transform_0, window_bounds = array<i64: 8, 32>}, {transform_indices = @transform_1, window_bounds = array<i64: 1, 32>}, {transform_indices = @transform_2, window_bounds = array<i64: 1>}, {transform_indices = @transform_3, window_bounds = array<i64: 8, 1>}]} {
    %c0_i32 = arith.constant 0 : i32
    %0 = arith.cmpi eq, %arg1, %c0_i32 : i32
    %1 = arith.extui %0 : i1 to i32
    %c0_i32_0 = arith.constant 0 : i32
    %2 = arith.cmpi ne, %1, %c0_i32_0 : i32
    scf.if %2 {
      %cst_10 = arith.constant 0.000000e+00 : f32
      %15 = vector.broadcast %cst_10 : f32 to vector<8x1xf32>
      %c0_11 = arith.constant 0 : index
      %c0_12 = arith.constant 0 : index
      %16 = vector.load %arg6[%c0_11, %c0_12] : memref<8x1xf32, #tpu.memory_space<vmem>>, vector<8x1xf32>
      tpu.vector_store %arg6[%c0_11, %c0_12], %15 {strides = array<i32>} : memref<8x1xf32, #tpu.memory_space<vmem>>, vector<8x1xf32>,
    } else {
    }
    %c0 = arith.constant 0 : index
    %c0_1 = arith.constant 0 : index
    %3 = vector.load %arg2[%c0, %c0_1] : memref<8x32xf32, #tpu.memory_space<vmem>>, vector<8x32xf32>
    %c0_2 = arith.constant 0 : index
    %c0_3 = arith.constant 0 : index
    %4 = vector.load %arg3[%c0_2, %c0_3] : memref<1x32xf32, #tpu.memory_space<vmem>>, vector<1x32xf32>
    %5 = vector.broadcast %4 : vector<1x32xf32> to vector<8x32xf32>
    %6 = arith.mulf %3, %5 : vector<8x32xf32>
    %c0_4 = arith.constant 0 : index
    %c0_5 = arith.constant 0 : index
    %7 = vector.load %arg6[%c0_4, %c0_5] : memref<8x1xf32, #tpu.memory_space<vmem>>, vector<8x1xf32>
    %cst = arith.constant dense<0.000000e+00> : vector<8xf32>
    %8 = vector.multi_reduction <add>, %6, %cst [1] : vector<8x32xf32> to vector<8xf32>
    %9 = vector.shape_cast %8 : vector<8xf32> to vector<8x1xf32>
    %10 = arith.addf %7, %9 : vector<8x1xf32>
    %c0_6 = arith.constant 0 : index
    %c0_7 = arith.constant 0 : index
    %11 = vector.load %arg6[%c0_6, %c0_7] : memref<8x1xf32, #tpu.memory_space<vmem>>, vector<8x1xf32>
    tpu.vector_store %arg6[%c0_6, %c0_7], %10 {strides = array<i32>} : memref<8x1xf32, #tpu.memory_space<vmem>>, vector<8x1xf32>,
    %c0_i32_8 = arith.constant 0 : i32
    %12 = arith.cmpi eq, %arg1, %c0_i32_8 : i32
    %13 = arith.extui %12 : i1 to i32
    %c0_i32_9 = arith.constant 0 : i32
    %14 = arith.cmpi ne, %13, %c0_i32_9 : i32
    scf.if %14 {
      %c0_10 = arith.constant 0 : index
      %c0_11 = arith.constant 0 : index
      %15 = vector.load %arg6[%c0_10, %c0_11] : memref<8x1xf32, #tpu.memory_space<vmem>>, vector<8x1xf32>
      %c0_12 = arith.constant 0 : index
      %16 = memref.load %arg4[%c0_12] : memref<1xf32, #tpu.memory_space<smem>>
      %17 = vector.broadcast %16 : f32 to vector<8x1xf32>
      %18 = arith.addf %15, %17 : vector<8x1xf32>
      %19 = arith.negf %18 : vector<8x1xf32>
      %20 = math.exp %19 : vector<8x1xf32>
      %cst_13 = arith.constant 1.000000e+00 : f32
      %21 = vector.broadcast %cst_13 : f32 to vector<8x1xf32>
      %22 = arith.addf %21, %20 : vector<8x1xf32>
      %23 = arith.divf %21, %22 : vector<8x1xf32>
      %c0_14 = arith.constant 0 : index
      %c0_15 = arith.constant 0 : index
      %24 = vector.load %arg5[%c0_14, %c0_15] : memref<8x1xf32, #tpu.memory_space<vmem>>, vector<8x1xf32>
      tpu.vector_store %arg5[%c0_14, %c0_15], %23 {strides = array<i32>} : memref<8x1xf32, #tpu.memory_space<vmem>>, vector<8x1xf32>,
    } else {
    }
    return
  }
  func.func @transform_0(%arg0: i32, %arg1: i32) -> (i32, i32) {
    %c0_i32 = arith.constant 0 : i32
    return %arg0, %arg1 : i32, i32
  }
  func.func @transform_1(%arg0: i32, %arg1: i32) -> (i32, i32) {
    %c0_i32 = arith.constant 0 : i32
    %c0_i32_0 = arith.constant 0 : i32
    return %c0_i32, %arg1 : i32, i32
  }
  func.func @transform_2(%arg0: i32, %arg1: i32) -> i32 {
    %c0_i32 = arith.constant 0 : i32
    %c0_i32_0 = arith.constant 0 : i32
    return %c0_i32 : i32
  }
  func.func @transform_3(%arg0: i32, %arg1: i32) -> (i32, i32) {
    %c0_i32 = arith.constant 0 : i32
    %c0_i32_0 = arith.constant 0 : i32
    return %arg0, %c0_i32 : i32, i32
  }
}

</mosaic_0001>

<llo_original>
// kernel: tpu_custom_call.1
$region0: #{tpu_custom_call.1}
  #allocation0 [shape = 'u32[]', space=smem, size = 0x4, offset = 0x4, fixed_abs, tag = 'smem constant byte address 0x4 - core index']
  #allocation1 [shape = 'u32[72,128]{1,0:T(1,128)}', space=vmem, size = 0x9000, scoped, tag = 'internal scratch']
  #allocation2 [shape = 'f32[8,1]{1,0:T(8,128)}', space=vmem, size = 0x1000, scoped, tag = 'scratch operand']
  #allocation3 [shape = 'f32[1]{0:T(128)S(6)}', space=smem, size = 0x200, scoped, tag = 'scoped memory for tpu_custom_call.1']
  %s0 = inlined_call_operand.hbm [shape: f32[8,32], index: 0, kind: input, shape index: {}]
  %s1 = inlined_call_operand.vmem [shape: f32[1,32], index: 1, kind: input, shape index: {}]
  %s2 = inlined_call_operand.<no memory space> [shape: f32[1], index: 2, kind: input, shape index: {}]
  %s3 = inlined_call_operand.vmem [shape: f32[8,1], index: 3, kind: output, shape index: {}]
  %s4 = sld [smem:[#allocation0]]
  $region34: #{tpu_custom_call.1} parent=0
    _
  %s6 = ssub.s32 1, %s4
  %s7 = scalar_select 0, %s6, %s4
  %8 = sst [smem:[#allocation3]] %s2
  $region1: #{tpu_custom_call.1} parent=0
    #allocation4 [shape = 'u8[4096]{0}', space=vmem, size = 0x1000, scoped, tag = 'input window, operand 0, single buffered']
    #allocation5 [shape = 's32[1]{0}', space=sflag, size = 0x4, scoped, tag = 'scoped memory for tpu_custom_call.1']
    %9 = vsyncpa [#allocation5], 0
    // Predicated region
    $region2: #{tpu_custom_call.1} parent=1 // pred_check
      _
    $region3: #{tpu_custom_call.1} parent=1 // pred_check_branch
      %11 = sbr.rel (0) target = $region5
    $region4: #{tpu_custom_call.1} parent=1 // pred_region
      %13 = vsyncadd [#allocation5], 0
      %s15 = sshll.u32 %s0, 4
      %s16 = int_to_ptr.hbm [resolvable:$true] %s15
      %s17 = sshll.u32 [#allocation4], 4
      %s18 = int_to_ptr.vmem [resolvable:$true] %s17
      %20 = dma.hbm_to_vmem [thread:$0]  %s16, 128, %s18, [#allocation5]
    $region5: #{tpu_custom_call.1} parent=1 // pred_fallthru
      _
    // Predicated region
    $region6: #{tpu_custom_call.1} parent=1 // pred_check
      _
    $region7: #{tpu_custom_call.1} parent=1 // pred_check_branch
      %22 = sbr.rel (0) target = $region9
    $region8: #{tpu_custom_call.1} parent=1 // pred_region
      _
    $region9: #{tpu_custom_call.1} parent=1 // pred_fallthru
      _
    // Predicated region
    $region10: #{tpu_custom_call.1} parent=1 // pred_check
      _
    $region11: #{tpu_custom_call.1} parent=1 // pred_check_branch
      %24 = sbr.rel (0) target = $region13
    $region12: #{tpu_custom_call.1} parent=1 // pred_region
      _
    $region13: #{tpu_custom_call.1} parent=1 // pred_fallthru
      _
    // Predicated region
    $region14: #{tpu_custom_call.1} parent=1 // pred_check
      _
    $region15: #{tpu_custom_call.1} parent=1 // pred_check_branch
      %26 = sbr.rel (0) target = $region17
    $region16: #{tpu_custom_call.1} parent=1 // pred_region
      %28 = dma.done [#allocation5], 128
    $region17: #{tpu_custom_call.1} parent=1 // pred_fallthru
      _
    %p29 = scmp.eq.s32.totalorder 0, 0
    // Predicated region
    $region18: #{tpu_custom_call.1} parent=1 // pred_check
      %p30 = pneg %p29
    $region19: #{tpu_custom_call.1} parent=1 // pred_check_branch
      %32 = sbr.rel (%p30) target = $region21
    $region20: #{tpu_custom_call.1} parent=1 // pred_region
      %vm33 = vcmask 7168
      %34 = vst.msk [vmem:[#allocation2] sm:$0xff] %vm33, 0.0
    $region21: #{tpu_custom_call.1} parent=1 // pred_fallthru
      _
    %v35 = vld [vmem:[#allocation4] sm:$0xff]
    %v36 = vld [vmem:[%s1] sm:$0x1]
    %v38 = vperm.slane %v36, 0
    %v40 = vmul.f32 %v35, %v38
    %v41 = vld [vmem:[#allocation2] sm:$0xff]
    %vm42 = vcmask 261120
    %v43 = vsel %vm42, %v40, 0.0
    %44 = vadd.xlane.f32.xlu0 %v43
    %v45 = vpop.xlane.xlu0 %44
    %v46 = vadd.f32 %v41, %v45
    %vm47 = vcmask 7168
    %48 = vst.msk [vmem:[#allocation2] sm:$0xff] %vm47, %v46
    // Predicated region
    $region22: #{tpu_custom_call.1} parent=1 // pred_check
      %p49 = pneg %p29
    $region23: #{tpu_custom_call.1} parent=1 // pred_check_branch
      %51 = sbr.rel (%p49) target = $region25
    $region24: #{tpu_custom_call.1} parent=1 // pred_region
      %v52 = vld [vmem:[#allocation2] sm:$0xff]
      %s53 = sld [smem:[#allocation3]]
      %v54 = vstv %s53
      %v55 = vadd.f32 %v52, %v54
      %v56 = vxor.u32 %v55, 2147483648
      %v57 = vmul.f32 %v56, 1.442695
      %v58 = vpow.pop %v57
      %v59 = vadd.f32 %v58, 1.0
      %v60 = vrcp.pop %v59
      %v61 = vmul.f32 %v59, %v60
      %v62 = vsub.f32 1.0, %v61
      %v63 = vmul.f32 %v60, %v62
      %v64 = vadd.f32 %v60, %v63
      %vm65 = vweird.f32 %v59
      %vm66 = vweird.f32 %v60
      %vm67 = vmor %vm65, %vm66
      %v68 = vsel %vm67, %v60, %v64
      %v69 = vand.u32 2147483647, %v59
      %vm70 = vcmp.eq.f32.partialorder %v69, 8.507059e+37
      %v71 = vand.u32 %v59, 2147483648
      %v72 = vor.u32 1.1754944e-38, %v71
      %v73 = vsel %vm70, %v72, %v68
      %v74 = vmul.f32 1.0, %v73
      %75 = vst.msk [vmem:[%s3] sm:$0xff] %vm47, %v74
    $region25: #{tpu_custom_call.1} parent=1 // pred_fallthru
      _
    // Predicated region
    $region26: #{tpu_custom_call.1} parent=1 // pred_check
      _
    $region27: #{tpu_custom_call.1} parent=1 // pred_check_branch
      %77 = sbr.rel (0) target = $region29
    $region28: #{tpu_custom_call.1} parent=1 // pred_region
      _
    $region29: #{tpu_custom_call.1} parent=1 // pred_fallthru
      _
    // Predicated region
    $region30: #{tpu_custom_call.1} parent=1 // pred_check
      _
    $region31: #{tpu_custom_call.1} parent=1 // pred_check_branch
      %79 = sbr.rel (0) target = $region33
    $region32: #{tpu_custom_call.1} parent=1 // pred_region
      _
    $region33: #{tpu_custom_call.1} parent=1 // pred_fallthru
      _
    %80 = vsyncpa [#allocation5], 1

</llo_original>
